<compile_context>
chip_gen: v7x
topology: tpu7x:2x2x1
jax: 0.10.0
libtpu: 0.0.40
codegen_flags: <defaults>
</compile_context>

<pallas_src>
import jax
import jax.numpy as jnp
from jax.experimental import pallas as pl
from jax.experimental.pallas import tpu as pltpu


def _linear_kernel(x_ref, w_ref, b_ref, o_ref):
    # VPU elementwise multiply + XLU lane reduction; f32 accumulate.
    # x stays in its native dtype in HBM/VMEM; the upcast is VPU work that
    # hides under the input DMA.
    x = x_ref[...].astype(jnp.float32)              # (TB, D)
    w = w_ref[...].astype(jnp.float32)              # (1, D) -> broadcast over rows
    b = b_ref[0]                                    # scalar bias from SMEM
    y = jnp.sum(x * w, axis=-1, keepdims=True) + b  # (TB, 1)
    o_ref[...] = y.astype(o_ref.dtype)


def _round_up(n, m):
    return ((n + m - 1) // m) * m


def _sublane_multiple(dtype):
    # Sub-32-bit dtypes pack along sublanes: f32 -> 8 rows, bf16 -> 16, int8 -> 32.
    itemsize = jnp.dtype(dtype).itemsize
    return max(8, (4 // max(itemsize, 1)) * 8)


def _vmem_budget_bytes():
    # Generation-aware budget: v5e/v6e have 128 MiB physical VMEM, v7x only 64 MiB.
    try:
        cap = pltpu.get_tpu_info().vmem_capacity_bytes
    except Exception:
        cap = 64 * 1024 * 1024
    if cap >= 96 * 1024 * 1024:                     # v5e / v6e
        return 48 * 1024 * 1024, 64 * 1024 * 1024   # (tile budget, vmem_limit_bytes)
    return 28 * 1024 * 1024, 44 * 1024 * 1024       # v7x-class: stay well under 64 MiB


def _choose_tb(B, D, dtype):
    itemsize = jnp.dtype(dtype).itemsize
    mult = _sublane_multiple(dtype)
    total_budget, vmem_limit = _vmem_budget_bytes()
    # Per-row VMEM bytes: 2 double-buffered native-dtype x tiles plus the f32
    # upcast and the (tb, D) f32 x*w temporary (worst case ~4 x-buffers).
    per_row = D * (2 * itemsize + 2 * 4)
    tb = max(mult, total_budget // max(per_row, 1))
    tb = min(tb, 32768)
    tb = max(mult, (tb // mult) * mult)
    # Never bigger than the (rounded-up) batch.
    tb = min(tb, _round_up(B, mult))
    # Keep >= 2 balanced grid steps when possible so v7x's 2 TCs both get work
    # (no-op on v5e/v6e, which have a single TensorCore).
    if B > mult:
        tb = min(tb, _round_up(pl.cdiv(B, 2), mult))
    return max(mult, tb), vmem_limit


def linear_forward(x, weight, bias, *, tb=None, force_pallas=False):
    """y = x @ weight.T + bias, exactly like torch.nn.Linear(input_dim, 1).

    x:      (B, D) float (f32 / bf16 streamed in native dtype)
    weight: (1, D) float  (PyTorch convention)
    bias:   (1,)   float
    returns (B, 1) float32
    """
    x = jnp.asarray(x)
    B, D = x.shape
    w_row = jnp.asarray(weight).reshape(1, D).astype(jnp.float32)
    b = jnp.asarray(bias).reshape(1).astype(jnp.float32)

    itemsize = jnp.dtype(x.dtype).itemsize
    mult = _sublane_multiple(x.dtype)

    # Small problems: pallas_call custom-call + pipeline setup costs more than
    # the work; XLA's fused multiply-reduce hits the same HBM roofline.
    if not force_pallas and (B * D * itemsize < (1 << 20) or B <= mult):
        return (x.astype(jnp.float32) @ w_row.T + b).astype(jnp.float32)

    if tb is None:
        tb, vmem_limit = _choose_tb(B, D, x.dtype)
    else:
        _, vmem_limit = _vmem_budget_bytes()
        tb = max(mult, (tb // mult) * mult)

    grid = pl.cdiv(B, tb)  # ragged last block is masked by Pallas

    cost = pl.CostEstimate(
        flops=2 * B * D,
        transcendentals=0,
        bytes_accessed=B * D * itemsize + D * 4 + B * 4,
    )

    out = pl.pallas_call(
        _linear_kernel,
        out_shape=jax.ShapeDtypeStruct((B, 1), jnp.float32),
        grid_spec=pltpu.PrefetchScalarGridSpec(
            num_scalar_prefetch=0,
            grid=(grid,),
            in_specs=[
                pl.BlockSpec((tb, D), lambda i: (i, 0)),   # batch-tiled x (native dtype)
                pl.BlockSpec((1, D), lambda i: (0, 0)),    # resident weight row
                pl.BlockSpec(memory_space=pltpu.MemorySpace.SMEM),  # bias scalar
            ],
            out_specs=pl.BlockSpec((tb, 1), lambda i: (i, 0)),
        ),
        compiler_params=pltpu.CompilerParams(
            dimension_semantics=("parallel",),
            vmem_limit_bytes=vmem_limit,
        ),
        cost_estimate=cost,
    )(x, w_row, b)
    return out


if __name__ == "__main__":
    key = jax.random.PRNGKey(0)
    kx, kw, kb, kx2, kx3 = jax.random.split(key, 5)

    # Small shapes consistent with the module (batch, input_dim).
    batch, input_dim = 8, 32
    bound = input_dim ** -0.5
    x = jax.random.normal(kx, (batch, input_dim), dtype=jnp.float32)
    weight = jax.random.uniform(kw, (1, input_dim), minval=-bound, maxval=bound,
                                dtype=jnp.float32)
    bias = jax.random.uniform(kb, (1,), minval=-bound, maxval=bound,
                              dtype=jnp.float32)

    out = jax.block_until_ready(linear_forward(x, weight, bias, force_pallas=True))
    ref = x @ weight.T + bias
    assert out.shape == (batch, 1)
    assert jnp.allclose(out, ref, atol=1e-5, rtol=1e-5)

    # Tiled + ragged path (grid > 1, batch not a multiple of TB, no host pad).
    batch2, dim2 = 200, 48
    x2 = jax.random.normal(kx2, (batch2, dim2), dtype=jnp.float32)
    w2 = jax.random.uniform(kw, (1, dim2), minval=-bound, maxval=bound,
                            dtype=jnp.float32)
    b2 = jax.random.uniform(kb, (1,), minval=-bound, maxval=bound,
                            dtype=jnp.float32)
    out2 = jax.block_until_ready(linear_forward(x2, w2, b2, tb=64, force_pallas=True))
    ref2 = x2 @ w2.T + b2
    assert out2.shape == (batch2, 1)
    assert jnp.allclose(out2, ref2, atol=1e-5, rtol=1e-5)

    # Native bf16 streaming path (no wrapper upcast; tb multiple of 16).
    batch3, dim3 = 64, 32
    x3 = jax.random.normal(kx3, (batch3, dim3), dtype=jnp.float32).astype(jnp.bfloat16)
    out3 = jax.block_until_ready(linear_forward(x3, weight, bias, force_pallas=True))
    ref3 = x3.astype(jnp.float32) @ weight.T + bias
    assert out3.shape == (batch3, 1)
    assert jnp.allclose(out3, ref3, atol=1e-4, rtol=1e-4)

    print("KERNEL_OK")
</pallas_src>

<mosaic_0001>
module attributes {stable_mosaic.version = 11 : i64} {
  func.func @_linear_kernel(%arg0: i32, %arg1: memref<8x32xf32, #tpu.memory_space<vmem>>, %arg2: memref<1x32xf32, #tpu.memory_space<vmem>>, %arg3: memref<1xf32, #tpu.memory_space<smem>>, %arg4: memref<8x1xf32, #tpu.memory_space<vmem>>) attributes {dimension_semantics = [#tpu.dimension_semantics<parallel>], iteration_bounds = array<i64: 1>, scalar_prefetch = 0 : i64, scratch_operands = 0 : i64, tpu.core_type = #tpu.core_type<tc>, window_params = [{transform_indices = @transform_0, window_bounds = array<i64: 8, 32>}, {pipeline_mode = #tpu.pipeline_mode<synchronous>, transform_indices = @transform_1, window_bounds = array<i64: 1, 32>}, {transform_indices = @transform_2, window_bounds = array<i64: 1>}, {transform_indices = @transform_3, window_bounds = array<i64: 8, 1>}]} {
    %c0 = arith.constant 0 : index
    %c0_0 = arith.constant 0 : index
    %0 = vector.load %arg1[%c0, %c0_0] : memref<8x32xf32, #tpu.memory_space<vmem>>, vector<8x32xf32>
    %c0_1 = arith.constant 0 : index
    %c0_2 = arith.constant 0 : index
    %1 = vector.load %arg2[%c0_1, %c0_2] : memref<1x32xf32, #tpu.memory_space<vmem>>, vector<1x32xf32>
    %c0_3 = arith.constant 0 : index
    %2 = memref.load %arg3[%c0_3] : memref<1xf32, #tpu.memory_space<smem>>
    %3 = vector.broadcast %1 : vector<1x32xf32> to vector<8x32xf32>
    %4 = arith.mulf %0, %3 : vector<8x32xf32>
    %cst = arith.constant dense<0.000000e+00> : vector<8xf32>
    %5 = vector.multi_reduction <add>, %4, %cst [1] : vector<8x32xf32> to vector<8xf32>
    %6 = vector.shape_cast %5 : vector<8xf32> to vector<8x1xf32>
    %7 = vector.broadcast %2 : f32 to vector<8x1xf32>
    %8 = arith.addf %6, %7 : vector<8x1xf32>
    %c0_4 = arith.constant 0 : index
    %c0_5 = arith.constant 0 : index
    %9 = vector.load %arg4[%c0_4, %c0_5] : memref<8x1xf32, #tpu.memory_space<vmem>>, vector<8x1xf32>
    tpu.vector_store %arg4[%c0_4, %c0_5], %8 {strides = array<i32>} : memref<8x1xf32, #tpu.memory_space<vmem>>, vector<8x1xf32>,
    return
  }
  func.func @transform_0(%arg0: i32) -> (i32, i32) {
    %c0_i32 = arith.constant 0 : i32
    %c0_i32_0 = arith.constant 0 : i32
    return %arg0, %c0_i32 : i32, i32
  }
  func.func @transform_1(%arg0: i32) -> (i32, i32) {
    %c0_i32 = arith.constant 0 : i32
    %c0_i32_0 = arith.constant 0 : i32
    %c0_i32_1 = arith.constant 0 : i32
    return %c0_i32, %c0_i32_0 : i32, i32
  }
  func.func @transform_2(%arg0: i32) -> i32 {
    %c0_i32 = arith.constant 0 : i32
    %c0_i32_0 = arith.constant 0 : i32
    return %c0_i32 : i32
  }
  func.func @transform_3(%arg0: i32) -> (i32, i32) {
    %c0_i32 = arith.constant 0 : i32
    %c0_i32_0 = arith.constant 0 : i32
    return %arg0, %c0_i32 : i32, i32
  }
}

</mosaic_0001>

<llo_original>
// kernel: tpu_custom_call.1
$region0: #{tpu_custom_call.1}
  #allocation0 [shape = 'u32[]', space=smem, size = 0x4, offset = 0x4, fixed_abs, tag = 'smem constant byte address 0x4 - core index']
  #allocation1 [shape = 'u32[144,128]{1,0:T(1,128)}', space=vmem, size = 0x12000, scoped, tag = 'internal scratch']
  #allocation2 [shape = 'f32[1]{0:T(128)S(6)}', space=smem, size = 0x200, scoped, tag = 'scoped memory for tpu_custom_call.1']
  %s0 = inlined_call_operand.hbm [shape: f32[8,32], index: 0, kind: input, shape index: {}]
  %s1 = inlined_call_operand.vmem [shape: f32[1,32], index: 1, kind: input, shape index: {}]
  %s2 = inlined_call_operand.<no memory space> [shape: f32[1], index: 2, kind: input, shape index: {}]
  %s3 = inlined_call_operand.vmem [shape: f32[8,1], index: 3, kind: output, shape index: {}]
  %s4 = sld [smem:[#allocation0]]
  $region26: #{tpu_custom_call.1} parent=0
    _
  %s6 = ssub.s32 1, %s4
  %s7 = scalar_select 0, %s6, %s4
  %8 = sst [smem:[#allocation2]] %s2
  $region1: #{tpu_custom_call.1} parent=0
    #allocation3 [shape = 'u8[4096]{0}', space=vmem, size = 0x1000, scoped, tag = 'input window, operand 0, single buffered']
    #allocation4 [shape = 's32[1]{0}', space=sflag, size = 0x4, scoped, tag = 'scoped memory for tpu_custom_call.1']
    %9 = vsyncpa [#allocation4], 0
    // Predicated region
    $region2: #{tpu_custom_call.1} parent=1 // pred_check
      _
    $region3: #{tpu_custom_call.1} parent=1 // pred_check_branch
      %11 = sbr.rel (0) target = $region5
    $region4: #{tpu_custom_call.1} parent=1 // pred_region
      %s13 = ssub.s32 128, 128
      %14 = vsyncadd [#allocation4], %s13
      %s16 = sshll.u32 [#allocation3], 4
      %s17 = int_to_ptr.vmem [resolvable:$true] %s16
      %19 = dma.hbm_to_vmem [thread:$0]  %s0, 128, %s17, [#allocation4]
    $region5: #{tpu_custom_call.1} parent=1 // pred_fallthru
      _
    // Predicated region
    $region6: #{tpu_custom_call.1} parent=1 // pred_check
      _
    $region7: #{tpu_custom_call.1} parent=1 // pred_check_branch
      %21 = sbr.rel (0) target = $region9
    $region8: #{tpu_custom_call.1} parent=1 // pred_region
      _
    $region9: #{tpu_custom_call.1} parent=1 // pred_fallthru
      _
    // Predicated region
    $region10: #{tpu_custom_call.1} parent=1 // pred_check
      _
    $region11: #{tpu_custom_call.1} parent=1 // pred_check_branch
      %23 = sbr.rel (0) target = $region13
    $region12: #{tpu_custom_call.1} parent=1 // pred_region
      _
    $region13: #{tpu_custom_call.1} parent=1 // pred_fallthru
      _
    // Predicated region
    $region14: #{tpu_custom_call.1} parent=1 // pred_check
      _
    $region15: #{tpu_custom_call.1} parent=1 // pred_check_branch
      %25 = sbr.rel (0) target = $region17
    $region16: #{tpu_custom_call.1} parent=1 // pred_region
      %26 = dma.done [#allocation4], 128
    $region17: #{tpu_custom_call.1} parent=1 // pred_fallthru
      _
    %v27 = vld [vmem:[#allocation3] sm:$0xff]
    %v28 = vld [vmem:[%s1] sm:$0x1]
    %s29 = sld [smem:[#allocation2]]
    %v31 = vlaneseq
    %v32 = vshrl.u32 %v31, 7
    %v33 = vsub.s32 0, %v32
    %v34 = vrot.slane %v28, %v33
    %v36 = vmul.f32 %v27, %v34
    %vm37 = vcmask 261120
    %v38 = vsel %vm37, %v36, 0.0
    %39 = vadd.xlane.f32.xlu0 %v38
    %v40 = vpop.xlane.xlu0 %39
    %v41 = vstv %s29
    %v42 = vadd.f32 %v40, %v41
    %vm43 = vcmask 7168
    %44 = vst.msk [vmem:[%s3] sm:$0xff] %vm43, %v42
    // Predicated region
    $region18: #{tpu_custom_call.1} parent=1 // pred_check
      _
    $region19: #{tpu_custom_call.1} parent=1 // pred_check_branch
      %46 = sbr.rel (0) target = $region21
    $region20: #{tpu_custom_call.1} parent=1 // pred_region
      _
    $region21: #{tpu_custom_call.1} parent=1 // pred_fallthru
      _
    // Predicated region
    $region22: #{tpu_custom_call.1} parent=1 // pred_check
      _
    $region23: #{tpu_custom_call.1} parent=1 // pred_check_branch
      %48 = sbr.rel (0) target = $region25
    $region24: #{tpu_custom_call.1} parent=1 // pred_region
      _
    $region25: #{tpu_custom_call.1} parent=1 // pred_fallthru
      _
    %49 = vsyncpa [#allocation4], 1

</llo_original>
